<compile_context>
chip_gen: v7x
topology: tpu7x:2x2x1
jax: 0.10.0
libtpu: 0.0.40
codegen_flags: <defaults>
</compile_context>

<pallas_src>
import jax
import jax.numpy as jnp
from jax import lax
from jax.experimental import pallas as pl
from jax.experimental.pallas import tpu as pltpu


def _projection_kernel(x_ref, w1_ref, b1_ref, w2_ref, b2_ref, o_ref, acc_ref):
    # x:  (TB, TK)     w1: (H, TK)   b1: (1, H)
    # w2: (Lp, H)      b2: (1, Lp)   o:  (TB, Lp)    acc: (TB, H) f32
    k = pl.program_id(1)

    @pl.when(k == 0)
    def _():
        # Fold the Linear1 bias into the accumulator initialization.
        acc_ref[...] = jnp.broadcast_to(
            b1_ref[...].astype(jnp.float32), acc_ref.shape
        )

    # Linear1 partial product: contract x's hidden tile against w1's in-dim
    # (PyTorch (out, in) layout -> x @ w1.T), accumulate in f32 on the MXU.
    acc_ref[...] += lax.dot_general(
        x_ref[...].astype(w1_ref.dtype),
        w1_ref[...],
        dimension_numbers=(((1,), (1,)), ((), ())),
        preferred_element_type=jnp.float32,
    )

    @pl.when(k == pl.num_programs(1) - 1)
    def _():
        # TODO(synk): training-mode dropout (p=0.25) would use pltpu.prng_seed
        # + pltpu.stateful_bernoulli; inference semantics = identity, skipped.
        h = jnp.maximum(acc_ref[...], 0.0)                        # ReLU
        y = lax.dot_general(
            h.astype(w2_ref.dtype),
            w2_ref[...],
            dimension_numbers=(((1,), (1,)), ((), ())),           # h @ w2.T
            preferred_element_type=jnp.float32,
        ) + b2_ref[...].astype(jnp.float32)
        o_ref[...] = y.astype(o_ref.dtype)


def _pick_tile(dim, candidates):
    """Largest candidate tile that divides `dim`; falls back to the full dim."""
    for t in candidates:
        if t <= dim and dim % t == 0:
            return t
    return dim


def attention1d_pooling_projection(x, w1, b1, w2, b2):
    """x: (B, H); w1: (H, H) PyTorch (out,in); b1: (H,); w2: (L, H); b2: (L,)."""
    B, H = x.shape
    L = w2.shape[0]

    # Pad batch to a multiple of 8 so the batch tile is always sublane-aligned.
    bp = pl.cdiv(B, 8) * 8
    x_p = jnp.pad(x, ((0, bp - B), (0, 0))) if bp != B else x

    # Batch tile (second-last dim: multiple of 8) and Linear1 contraction tile
    # (lane dim: multiple of 128 or full hidden size).
    tb = _pick_tile(bp, (256, 128, 64, 32, 16, 8))
    tk = _pick_tile(H, (512, 384, 256, 128))

    # Lane-dense output: pad the label dim up to a multiple of 128 (zeros) so
    # the final store is an unmasked full-lane vst; slice padding off outside.
    lp = pl.cdiv(L, 128) * 128
    if lp != L:
        w2_p = jnp.pad(w2, ((0, lp - L), (0, 0)))
        b2_p = jnp.pad(b2, (0, lp - L))
    else:
        w2_p, b2_p = w2, b2

    b1_2d = b1.reshape(1, H)
    b2_2d = b2_p.reshape(1, lp)

    nb = bp // tb
    nk = H // tk

    # Explicit VMEM budget: double-buffered pipelined blocks + f32 accumulator,
    # with headroom, capped at 64 MiB (v7x physical VMEM per TC).
    isz = 4
    needed = 2 * (tb * tk + H * tk + H + lp * H + lp + tb * lp) * isz
    needed += tb * H * isz
    vmem_limit = min(64 * 1024 * 1024, needed + (8 << 20))

    grid_spec = pltpu.PrefetchScalarGridSpec(
        num_scalar_prefetch=0,
        grid=(nb, nk),
        in_specs=[
            pl.BlockSpec((tb, tk), lambda i, k: (i, k)),   # x        (pipelined)
            pl.BlockSpec((H, tk), lambda i, k: (0, k)),    # w1 (out,in), K-tiled
            pl.BlockSpec((1, H), lambda i, k: (0, 0)),     # b1       (resident)
            pl.BlockSpec((lp, H), lambda i, k: (0, 0)),    # w2 padded (resident)
            pl.BlockSpec((1, lp), lambda i, k: (0, 0)),    # b2 padded (resident)
        ],
        out_specs=pl.BlockSpec((tb, lp), lambda i, k: (i, 0)),
        scratch_shapes=[pltpu.VMEM((tb, H), jnp.float32)],
    )

    out_padded = pl.pallas_call(
        _projection_kernel,
        out_shape=jax.ShapeDtypeStruct((bp, lp), x.dtype),
        grid_spec=grid_spec,
        compiler_params=pltpu.CompilerParams(
            dimension_semantics=("parallel", "arbitrary"),
            vmem_limit_bytes=vmem_limit,
        ),
    )(x_p, w1, b1_2d, w2_p, b2_2d)

    return out_padded[:B, :L]


def _reference(x, w1, b1, w2, b2):
    h = x @ w1.T + b1
    h = jnp.maximum(h, 0.0)
    return h @ w2.T + b2


if __name__ == "__main__":
    batch, hidden_size, num_labels = 8, 32, 8

    key = jax.random.PRNGKey(0)
    kx, kw1, kb1, kw2, kb2 = jax.random.split(key, 5)

    x = jax.random.normal(kx, (batch, hidden_size), dtype=jnp.float32)
    # PyTorch Linear parameter shapes: weight = (out, in), bias = (out,).
    w1 = jax.random.normal(kw1, (hidden_size, hidden_size), jnp.float32) * 0.1
    b1 = jax.random.normal(kb1, (hidden_size,), jnp.float32) * 0.1
    w2 = jax.random.normal(kw2, (num_labels, hidden_size), jnp.float32) * 0.1
    b2 = jax.random.normal(kb2, (num_labels,), jnp.float32) * 0.1

    out = attention1d_pooling_projection(x, w1, b1, w2, b2)
    out = jax.block_until_ready(out)

    ref = _reference(x, w1, b1, w2, b2)
    assert out.shape == (batch, num_labels)
    assert jnp.allclose(out, ref, atol=1e-4, rtol=1e-4), "mismatch vs reference"

    print("KERNEL_OK")
</pallas_src>

<mosaic_0001>
module attributes {stable_mosaic.version = 11 : i64} {
  func.func @_projection_kernel(%arg0: i32, %arg1: i32, %arg2: memref<8x32xf32, #tpu.memory_space<vmem>>, %arg3: memref<32x32xf32, #tpu.memory_space<vmem>>, %arg4: memref<1x32xf32, #tpu.memory_space<vmem>>, %arg5: memref<128x32xf32, #tpu.memory_space<vmem>>, %arg6: memref<1x128xf32, #tpu.memory_space<vmem>>, %arg7: memref<8x128xf32, #tpu.memory_space<vmem>>, %arg8: memref<8x32xf32, #tpu.memory_space<vmem>>) attributes {dimension_semantics = [#tpu.dimension_semantics<parallel>, #tpu.dimension_semantics<arbitrary>], iteration_bounds = array<i64: 1, 1>, scalar_prefetch = 0 : i64, scratch_operands = 1 : i64, tpu.core_type = #tpu.core_type<tc>, window_params = [{transform_indices = @transform_0, window_bounds = array<i64: 8, 32>}, {transform_indices = @transform_1, window_bounds = array<i64: 32, 32>}, {pipeline_mode = #tpu.pipeline_mode<synchronous>, transform_indices = @transform_2, window_bounds = array<i64: 1, 32>}, {pipeline_mode = #tpu.pipeline_mode<synchronous>, transform_indices = @transform_3, window_bounds = array<i64: 128, 32>}, {pipeline_mode = #tpu.pipeline_mode<synchronous>, transform_indices = @transform_4, window_bounds = array<i64: 1, 128>}, {transform_indices = @transform_5, window_bounds = array<i64: 8, 128>}]} {
    %c0_i32 = arith.constant 0 : i32
    %0 = arith.cmpi eq, %arg1, %c0_i32 : i32
    %1 = arith.extui %0 : i1 to i32
    %c0_i32_0 = arith.constant 0 : i32
    %2 = arith.cmpi ne, %1, %c0_i32_0 : i32
    scf.if %2 {
      %c0_10 = arith.constant 0 : index
      %c0_11 = arith.constant 0 : index
      %12 = vector.load %arg4[%c0_10, %c0_11] : memref<1x32xf32, #tpu.memory_space<vmem>>, vector<1x32xf32>
      %13 = vector.shape_cast %12 : vector<1x32xf32> to vector<1x32xf32>
      %14 = vector.broadcast %13 : vector<1x32xf32> to vector<8x32xf32>
      %c0_12 = arith.constant 0 : index
      %c0_13 = arith.constant 0 : index
      %15 = vector.load %arg8[%c0_12, %c0_13] : memref<8x32xf32, #tpu.memory_space<vmem>>, vector<8x32xf32>
      tpu.vector_store %arg8[%c0_12, %c0_13], %14 {strides = array<i32>} : memref<8x32xf32, #tpu.memory_space<vmem>>, vector<8x32xf32>,
    } else {
    }
    %c0 = arith.constant 0 : index
    %c0_1 = arith.constant 0 : index
    %3 = vector.load %arg8[%c0, %c0_1] : memref<8x32xf32, #tpu.memory_space<vmem>>, vector<8x32xf32>
    %c0_2 = arith.constant 0 : index
    %c0_3 = arith.constant 0 : index
    %4 = vector.load %arg2[%c0_2, %c0_3] : memref<8x32xf32, #tpu.memory_space<vmem>>, vector<8x32xf32>
    %c0_4 = arith.constant 0 : index
    %c0_5 = arith.constant 0 : index
    %5 = vector.load %arg3[%c0_4, %c0_5] : memref<32x32xf32, #tpu.memory_space<vmem>>, vector<32x32xf32>
    %cst = arith.constant dense<0.000000e+00> : vector<8x32xf32>
    %6 = tpu.matmul %4, %5, %cst {dimension_numbers = #tpu.dot_dimension_numbers<[1], [1], [0], [0], [0, 0, 1, 0], [], []>} : vector<8x32xf32>, vector<32x32xf32>, vector<8x32xf32> -> vector<8x32xf32>
    %7 = arith.addf %3, %6 : vector<8x32xf32>
    %c0_6 = arith.constant 0 : index
    %c0_7 = arith.constant 0 : index
    %8 = vector.load %arg8[%c0_6, %c0_7] : memref<8x32xf32, #tpu.memory_space<vmem>>, vector<8x32xf32>
    tpu.vector_store %arg8[%c0_6, %c0_7], %7 {strides = array<i32>} : memref<8x32xf32, #tpu.memory_space<vmem>>, vector<8x32xf32>,
    %c0_i32_8 = arith.constant 0 : i32
    %9 = arith.cmpi eq, %arg1, %c0_i32_8 : i32
    %10 = arith.extui %9 : i1 to i32
    %c0_i32_9 = arith.constant 0 : i32
    %11 = arith.cmpi ne, %10, %c0_i32_9 : i32
    scf.if %11 {
      %c0_10 = arith.constant 0 : index
      %c0_11 = arith.constant 0 : index
      %12 = vector.load %arg8[%c0_10, %c0_11] : memref<8x32xf32, #tpu.memory_space<vmem>>, vector<8x32xf32>
      %cst_12 = arith.constant 0.000000e+00 : f32
      %13 = vector.broadcast %cst_12 : f32 to vector<8x32xf32>
      %14 = arith.maximumf %12, %13 : vector<8x32xf32>
      %c0_13 = arith.constant 0 : index
      %c0_14 = arith.constant 0 : index
      %15 = vector.load %arg5[%c0_13, %c0_14] : memref<128x32xf32, #tpu.memory_space<vmem>>, vector<128x32xf32>
      %cst_15 = arith.constant dense<0.000000e+00> : vector<8x128xf32>
      %16 = tpu.matmul %14, %15, %cst_15 {dimension_numbers = #tpu.dot_dimension_numbers<[1], [1], [0], [0], [0, 0, 1, 0], [], []>} : vector<8x32xf32>, vector<128x32xf32>, vector<8x128xf32> -> vector<8x128xf32>
      %c0_16 = arith.constant 0 : index
      %c0_17 = arith.constant 0 : index
      %17 = vector.load %arg6[%c0_16, %c0_17] : memref<1x128xf32, #tpu.memory_space<vmem>>, vector<1x128xf32>
      %18 = vector.broadcast %17 : vector<1x128xf32> to vector<8x128xf32>
      %19 = arith.addf %16, %18 : vector<8x128xf32>
      %c0_18 = arith.constant 0 : index
      %c0_19 = arith.constant 0 : index
      %20 = vector.load %arg7[%c0_18, %c0_19] : memref<8x128xf32, #tpu.memory_space<vmem>>, vector<8x128xf32>
      tpu.vector_store %arg7[%c0_18, %c0_19], %19 {strides = array<i32>} : memref<8x128xf32, #tpu.memory_space<vmem>>, vector<8x128xf32>,
    } else {
    }
    return
  }
  func.func @transform_0(%arg0: i32, %arg1: i32) -> (i32, i32) {
    %c0_i32 = arith.constant 0 : i32
    return %arg0, %arg1 : i32, i32
  }
  func.func @transform_1(%arg0: i32, %arg1: i32) -> (i32, i32) {
    %c0_i32 = arith.constant 0 : i32
    %c0_i32_0 = arith.constant 0 : i32
    return %c0_i32, %arg1 : i32, i32
  }
  func.func @transform_2(%arg0: i32, %arg1: i32) -> (i32, i32) {
    %c0_i32 = arith.constant 0 : i32
    %c0_i32_0 = arith.constant 0 : i32
    %c0_i32_1 = arith.constant 0 : i32
    return %c0_i32, %c0_i32_0 : i32, i32
  }
  func.func @transform_3(%arg0: i32, %arg1: i32) -> (i32, i32) {
    %c0_i32 = arith.constant 0 : i32
    %c0_i32_0 = arith.constant 0 : i32
    %c0_i32_1 = arith.constant 0 : i32
    return %c0_i32, %c0_i32_0 : i32, i32
  }
  func.func @transform_4(%arg0: i32, %arg1: i32) -> (i32, i32) {
    %c0_i32 = arith.constant 0 : i32
    %c0_i32_0 = arith.constant 0 : i32
    %c0_i32_1 = arith.constant 0 : i32
    return %c0_i32, %c0_i32_0 : i32, i32
  }
  func.func @transform_5(%arg0: i32, %arg1: i32) -> (i32, i32) {
    %c0_i32 = arith.constant 0 : i32
    %c0_i32_0 = arith.constant 0 : i32
    return %arg0, %c0_i32 : i32, i32
  }
}

</mosaic_0001>

<llo_original>
// kernel: tpu_custom_call.1
$region0: #{tpu_custom_call.1}
  #allocation0 [shape = 'u32[]', space=smem, size = 0x4, offset = 0x4, fixed_abs, tag = 'smem constant byte address 0x4 - core index']
  #allocation1 [shape = 'u32[144,128]{1,0:T(1,128)}', space=vmem, size = 0x12000, scoped, tag = 'internal scratch']
  #allocation2 [shape = 'f32[8,32]{1,0:T(8,128)}', space=vmem, size = 0x1000, scoped, tag = 'scratch operand']
  %s0 = inlined_call_operand.vmem [shape: f32[8,32], index: 0, kind: input, shape index: {}]
  %s1 = inlined_call_operand.vmem [shape: f32[32,32], index: 1, kind: input, shape index: {}]
  %s2 = inlined_call_operand.vmem [shape: f32[1,32], index: 2, kind: input, shape index: {}]
  %s3 = inlined_call_operand.vmem [shape: f32[128,32], index: 3, kind: input, shape index: {}]
  %s4 = inlined_call_operand.vmem [shape: f32[1,128], index: 4, kind: input, shape index: {}]
  %s5 = inlined_call_operand.hbm [shape: f32[8,128], index: 5, kind: output, shape index: {}]
  %s6 = sld [smem:[#allocation0]]
  $region38: #{tpu_custom_call.1} parent=0
    _
  %s8 = ssub.s32 1, %s6
  %s9 = scalar_select 0, %s8, %s6
  $region1: #{tpu_custom_call.1} parent=0
    #allocation3 [shape = 'u8[4096]{0}', space=vmem, size = 0x1000, scoped, tag = 'output window, operand 0, single buffered']
    #allocation4 [shape = 's32[1]{0}', space=sflag, size = 0x4, scoped, tag = 'scoped memory for tpu_custom_call.1']
    %10 = vsyncpa [#allocation4], 0
    // Predicated region
    $region2: #{tpu_custom_call.1} parent=1 // pred_check
      _
    $region3: #{tpu_custom_call.1} parent=1 // pred_check_branch
      %12 = sbr.rel (0) target = $region5
    $region4: #{tpu_custom_call.1} parent=1 // pred_region
      _
    $region5: #{tpu_custom_call.1} parent=1 // pred_fallthru
      _
    // Predicated region
    $region6: #{tpu_custom_call.1} parent=1 // pred_check
      _
    $region7: #{tpu_custom_call.1} parent=1 // pred_check_branch
      %14 = sbr.rel (0) target = $region9
    $region8: #{tpu_custom_call.1} parent=1 // pred_region
      _
    $region9: #{tpu_custom_call.1} parent=1 // pred_fallthru
      _
    // Predicated region
    $region10: #{tpu_custom_call.1} parent=1 // pred_check
      _
    $region11: #{tpu_custom_call.1} parent=1 // pred_check_branch
      %16 = sbr.rel (0) target = $region13
    $region12: #{tpu_custom_call.1} parent=1 // pred_region
      _
    $region13: #{tpu_custom_call.1} parent=1 // pred_fallthru
      _
    // Predicated region
    $region14: #{tpu_custom_call.1} parent=1 // pred_check
      _
    $region15: #{tpu_custom_call.1} parent=1 // pred_check_branch
      %18 = sbr.rel (0) target = $region17
    $region16: #{tpu_custom_call.1} parent=1 // pred_region
      _
    $region17: #{tpu_custom_call.1} parent=1 // pred_fallthru
      _
    // Predicated region
    $region18: #{tpu_custom_call.1} parent=1 // pred_check
      _
    $region19: #{tpu_custom_call.1} parent=1 // pred_check_branch
      %20 = sbr.rel (0) target = $region21
    $region20: #{tpu_custom_call.1} parent=1 // pred_region
      _
    $region21: #{tpu_custom_call.1} parent=1 // pred_fallthru
      _
    %p21 = scmp.eq.s32.totalorder 0, 0
    // Predicated region
    $region22: #{tpu_custom_call.1} parent=1 // pred_check
      %p22 = pneg %p21
    $region23: #{tpu_custom_call.1} parent=1 // pred_check_branch
      %24 = sbr.rel (%p22) target = $region25
    $region24: #{tpu_custom_call.1} parent=1 // pred_region
      %v25 = vld [vmem:[%s2] sm:$0x1]
      %v27 = vlaneseq
      %v28 = vshrl.u32 %v27, 7
      %v29 = vsub.s32 0, %v28
      %v30 = vrot.slane %v25, %v29
      %vm32 = vcmask 261120
      %33 = vst.msk [vmem:[#allocation2] sm:$0xff] %vm32, %v30
    $region25: #{tpu_custom_call.1} parent=1 // pred_fallthru
      _
    %v34 = vld [vmem:[#allocation2] sm:$0xff]
    %v35 = vld [vmem:[%s0] sm:$0xff]
    %v36 = vld [vmem:[%s1] sm:$0xff]
    %v37 = vld [vmem:[%s1 + $0x8] sm:$0xff]
    %v38 = vld [vmem:[%s1 + $0x10] sm:$0xff]
    %v39 = vld [vmem:[%s1 + $0x18] sm:$0xff]
    %vm40 = vcmask 261120
    %v42 = vsel %vm40, %v35, 0
    %v45 = vsel %vm40, %v36, 0
    %v48 = vsel %vm40, %v37, 0
    %v51 = vsel %vm40, %v38, 0
    %v54 = vsel %vm40, %v39, 0
    %56 = vmatprep.subr.mxu0 0.0
    %57 = vmatpush1.xpose.msra.mxu0 %v45
    %58 = vmatprep.subr.mxu0 0.0
    %59 = vmatpush1.xpose.msra.mxu0 %v48
    %60 = vmatprep.subr.mxu0 0.0
    %61 = vmatpush1.xpose.msra.mxu0 %v51
    %62 = vmatprep.subr.mxu0 0.0
    %63 = vmatpush1.xpose.msra.mxu0 %v54
    %64 = vmatprep.subr.mxu0 0.0
    %65 = vmatpush1.xpose.msra.mxu0 0.0
    %66 = vmatprep.subr.mxu0 0.0
    %67 = vmatpush1.xpose.msra.mxu0 0.0
    %68 = vmatprep.subr.mxu0 0.0
    %69 = vmatpush1.xpose.msra.mxu0 0.0
    %70 = vmatprep.subr.mxu0 0.0
    %71 = vmatpush1.xpose.msra.mxu0 0.0
    %72 = vmatprep.subr.mxu0 0.0
    %73 = vmatpush1.xpose.msra.mxu0 0.0
    %74 = vmatprep.subr.mxu0 0.0
    %75 = vmatpush1.xpose.msra.mxu0 0.0
    %76 = vmatprep.subr.mxu0 0.0
    %77 = vmatpush1.xpose.msra.mxu0 0.0
    %78 = vmatprep.subr.mxu0 0.0
    %79 = vmatpush1.xpose.msra.mxu0 0.0
    %80 = vmatprep.subr.mxu0 0.0
    %81 = vmatpush1.xpose.msra.mxu0 0.0
    %82 = vmatprep.subr.mxu0 0.0
    %83 = vmatpush1.xpose.msra.mxu0 0.0
    %84 = vmatprep.subr.mxu0 0.0
    %85 = vmatpush1.xpose.msra.mxu0 0.0
    %86 = vmatprep.subr.mxu0 0.0
    %87 = vmatpush1.xpose.msra.mxu0 0.0
    %88 = vmatprep.subr.mxu0 0.0
    %89 = vmatpush1.xpose.msra.mxu0 0.0
    %90 = vmatprep.subr.mxu0 0.0
    %91 = vmatpush1.xpose.msra.mxu0 0.0
    %92 = vmatprep.subr.mxu0 0.0
    %93 = vmatpush1.xpose.msra.mxu0 0.0
    %94 = vmatprep.subr.mxu0 0.0
    %95 = vmatpush1.xpose.msra.mxu0 0.0
    %96 = vmatprep.subr.mxu0 0.0
    %97 = vmatpush1.xpose.msra.mxu0 0.0
    %98 = vmatprep.subr.mxu0 0.0
    %99 = vmatpush1.xpose.msra.mxu0 0.0
    %100 = vmatprep.subr.mxu0 0.0
    %101 = vmatpush1.xpose.msra.mxu0 0.0
    %102 = vmatprep.subr.mxu0 0.0
    %103 = vmatpush1.xpose.msra.mxu0 0.0
    %104 = vmatprep.subr.mxu0 0.0
    %105 = vmatpush1.xpose.msra.mxu0 0.0
    %106 = vmatprep.subr.mxu0 0.0
    %107 = vmatpush1.xpose.msra.mxu0 0.0
    %108 = vmatprep.subr.mxu0 0.0
    %109 = vmatpush1.xpose.msra.mxu0 0.0
    %110 = vmatprep.subr.mxu0 0.0
    %111 = vmatpush1.xpose.msra.mxu0 0.0
    %112 = vmatprep.subr.mxu0 0.0
    %113 = vmatpush1.xpose.msra.mxu0 0.0
    %114 = vmatprep.subr.mxu0 0.0
    %115 = vmatpush1.xpose.msra.mxu0 0.0
    %116 = vmatprep.subr.mxu0 0.0
    %117 = vmatpush1.xpose.msra.mxu0 0.0
    %118 = vmatprep.subr.mxu0 0.0
    %119 = vmatpush1.xpose.msra.mxu0 0.0
    %120 = vmatprep.mubr.f32.mxu0 0.0
    %121 = vmatmul.mubr.f32.gmra.mrb[0].mxu0 %v42
    %v122 = vpop.f32.mrb[0].mxu0
    %v123 = vadd.f32 0.0, %v122
    %v124 = vpop.f32.mrb[0].mxu0
    %125 = vdwg.mxu0
    %v126 = vadd.f32 %v34, %v123
    %127 = vst.msk [vmem:[#allocation2] sm:$0xff] %vm40, %v126
    // Predicated region
    $region26: #{tpu_custom_call.1} parent=1 // pred_check
      %p128 = pneg %p21
    $region27: #{tpu_custom_call.1} parent=1 // pred_check_branch
      %130 = sbr.rel (%p128) target = $region29
    $region28: #{tpu_custom_call.1} parent=1 // pred_region
      %v131 = vld [vmem:[#allocation2] sm:$0xff]
      %v132 = vmax.f32 %v131, 0.0
      %v133 = vld [vmem:[%s3] sm:$0xff]
      %v134 = vld [vmem:[%s3 + $0x8] sm:$0xff]
      %v135 = vld [vmem:[%s3 + $0x10] sm:$0xff]
      %v136 = vld [vmem:[%s3 + $0x18] sm:$0xff]
      %v137 = vld [vmem:[%s3 + $0x20] sm:$0xff]
      %v138 = vld [vmem:[%s3 + $0x28] sm:$0xff]
      %v139 = vld [vmem:[%s3 + $0x30] sm:$0xff]
      %v140 = vld [vmem:[%s3 + $0x38] sm:$0xff]
      %v141 = vld [vmem:[%s3 + $0x40] sm:$0xff]
      %v142 = vld [vmem:[%s3 + $0x48] sm:$0xff]
      %v143 = vld [vmem:[%s3 + $0x50] sm:$0xff]
      %v144 = vld [vmem:[%s3 + $0x58] sm:$0xff]
      %v145 = vld [vmem:[%s3 + $0x60] sm:$0xff]
      %v146 = vld [vmem:[%s3 + $0x68] sm:$0xff]
      %v147 = vld [vmem:[%s3 + $0x70] sm:$0xff]
      %v148 = vld [vmem:[%s3 + $0x78] sm:$0xff]
      %v149 = vld [vmem:[%s4] sm:$0x1]
      %v151 = vlaneseq
      %v152 = vshrl.u32 %v151, 7
      %v153 = vsub.s32 0, %v152
      %v154 = vrot.slane %v149, %v153
      %v157 = vsel %vm40, %v132, 0
      %v160 = vsel %vm40, %v133, 0
      %v163 = vsel %vm40, %v134, 0
      %v166 = vsel %vm40, %v135, 0
      %v169 = vsel %vm40, %v136, 0
      %v172 = vsel %vm40, %v137, 0
      %v175 = vsel %vm40, %v138, 0
      %v178 = vsel %vm40, %v139, 0
      %v181 = vsel %vm40, %v140, 0
      %v184 = vsel %vm40, %v141, 0
      %v187 = vsel %vm40, %v142, 0
      %v190 = vsel %vm40, %v143, 0
      %v193 = vsel %vm40, %v144, 0
      %v196 = vsel %vm40, %v145, 0
      %v199 = vsel %vm40, %v146, 0
      %v202 = vsel %vm40, %v147, 0
      %v205 = vsel %vm40, %v148, 0
      %207 = vmatprep.subr.mxu0 0.0
      %208 = vmatpush1.xpose.msra.mxu0 %v160
      %209 = vmatprep.subr.mxu0 0.0
      %210 = vmatpush1.xpose.msra.mxu0 %v163
      %211 = vmatprep.subr.mxu0 0.0
      %212 = vmatpush1.xpose.msra.mxu0 %v166
      %213 = vmatprep.subr.mxu0 0.0
      %214 = vmatpush1.xpose.msra.mxu0 %v169
      %215 = vmatprep.subr.mxu0 0.0
      %216 = vmatpush1.xpose.msra.mxu0 %v172
      %217 = vmatprep.subr.mxu0 0.0
      %218 = vmatpush1.xpose.msra.mxu0 %v175
      %219 = vmatprep.subr.mxu0 0.0
      %220 = vmatpush1.xpose.msra.mxu0 %v178
      %221 = vmatprep.subr.mxu0 0.0
      %222 = vmatpush1.xpose.msra.mxu0 %v181
      %223 = vmatprep.subr.mxu0 0.0
      %224 = vmatpush1.xpose.msra.mxu0 %v184
      %225 = vmatprep.subr.mxu0 0.0
      %226 = vmatpush1.xpose.msra.mxu0 %v187
      %227 = vmatprep.subr.mxu0 0.0
      %228 = vmatpush1.xpose.msra.mxu0 %v190
      %229 = vmatprep.subr.mxu0 0.0
      %230 = vmatpush1.xpose.msra.mxu0 %v193
      %231 = vmatprep.subr.mxu0 0.0
      %232 = vmatpush1.xpose.msra.mxu0 %v196
      %233 = vmatprep.subr.mxu0 0.0
      %234 = vmatpush1.xpose.msra.mxu0 %v199
      %235 = vmatprep.subr.mxu0 0.0
      %236 = vmatpush1.xpose.msra.mxu0 %v202
      %237 = vmatprep.subr.mxu0 0.0
      %238 = vmatpush1.xpose.msra.mxu0 %v205
      %239 = vmatprep.subr.mxu0 0.0
      %240 = vmatpush1.xpose.msra.mxu0 0.0
      %241 = vmatprep.subr.mxu0 0.0
      %242 = vmatpush1.xpose.msra.mxu0 0.0
      %243 = vmatprep.subr.mxu0 0.0
      %244 = vmatpush1.xpose.msra.mxu0 0.0
      %245 = vmatprep.subr.mxu0 0.0
      %246 = vmatpush1.xpose.msra.mxu0 0.0
      %247 = vmatprep.subr.mxu0 0.0
      %248 = vmatpush1.xpose.msra.mxu0 0.0
      %249 = vmatprep.subr.mxu0 0.0
      %250 = vmatpush1.xpose.msra.mxu0 0.0
      %251 = vmatprep.subr.mxu0 0.0
      %252 = vmatpush1.xpose.msra.mxu0 0.0
      %253 = vmatprep.subr.mxu0 0.0
      %254 = vmatpush1.xpose.msra.mxu0 0.0
      %255 = vmatprep.subr.mxu0 0.0
      %256 = vmatpush1.xpose.msra.mxu0 0.0
      %257 = vmatprep.subr.mxu0 0.0
      %258 = vmatpush1.xpose.msra.mxu0 0.0
      %259 = vmatprep.subr.mxu0 0.0
      %260 = vmatpush1.xpose.msra.mxu0 0.0
      %261 = vmatprep.subr.mxu0 0.0
      %262 = vmatpush1.xpose.msra.mxu0 0.0
      %263 = vmatprep.subr.mxu0 0.0
      %264 = vmatpush1.xpose.msra.mxu0 0.0
      %265 = vmatprep.subr.mxu0 0.0
      %266 = vmatpush1.xpose.msra.mxu0 0.0
      %267 = vmatprep.subr.mxu0 0.0
      %268 = vmatpush1.xpose.msra.mxu0 0.0
      %269 = vmatprep.subr.mxu0 0.0
      %270 = vmatpush1.xpose.msra.mxu0 0.0
      %271 = vmatprep.mubr.f32.mxu0 0.0
      %272 = vmatmul.mubr.f32.gmra.mrb[0].mxu0 %v157
      %v273 = vpop.f32.mrb[0].mxu0
      %v274 = vadd.f32 %v154, %v273
      %v275 = vpop.f32.mrb[0].mxu0
      %276 = vdwg.mxu0
      %277 = vst [vmem:[#allocation3] sm:$0xff] %v274
    $region29: #{tpu_custom_call.1} parent=1 // pred_fallthru
      _
    // Predicated region
    $region30: #{tpu_custom_call.1} parent=1 // pred_check
      _
    $region31: #{tpu_custom_call.1} parent=1 // pred_check_branch
      %279 = sbr.rel (0) target = $region33
    $region32: #{tpu_custom_call.1} parent=1 // pred_region
      %s281 = ssub.s32 128, 128
      %282 = vsyncadd [#allocation4], %s281
      %s284 = sshll.u32 [#allocation3], 4
      %s285 = int_to_ptr.vmem [resolvable:$true] %s284
      %287 = dma.vmem_to_hbm [thread:$0]  %s285, 128, %s5, [#allocation4]
    $region33: #{tpu_custom_call.1} parent=1 // pred_fallthru
      _
    // Predicated region
    $region34: #{tpu_custom_call.1} parent=1 // pred_check
      _
    $region35: #{tpu_custom_call.1} parent=1 // pred_check_branch
      %289 = sbr.rel (0) target = $region37
    $region36: #{tpu_custom_call.1} parent=1 // pred_region
      %290 = dma.done [#allocation4], 128
    $region37: #{tpu_custom_call.1} parent=1 // pred_fallthru
      _
    %291 = vsyncpa [#allocation4], 1

</llo_original>
